<compile_context>
chip_gen: v5e
topology: v5e:2x2
jax: 0.10.0
libtpu: 0.0.40
codegen_flags: <defaults>
</compile_context>

<pallas_src>
import functools

import jax
import jax.numpy as jnp
from jax import lax
from jax.experimental import pallas as pl
from jax.experimental.pallas import tpu as pltpu


def _round_up(x, m):
    return ((x + m - 1) // m) * m


def _fused_conv_block_kernel(x_ref, w_ref, b_ref, sel_ref, o_ref, *,
                             kh, kw, Wp, Mspan, conv_stride, pool_k):
    """Conv2d + bias + ReLU + MaxPool2d for one image, entirely in VMEM.

    x_ref:   (Cin, L)            zero-padded image, flattened row-major (y*Wp + x)
    w_ref:   (kh*kw, Cout, Cin)  per-tap weight matrices
    b_ref:   (Cout, 1)           bias column
    sel_ref: (Mh, P)             0/1 pool-decimation matrix, P = Hpo*Wpo
    o_ref:   (Cout, P)           pooled output (channels on sublanes, pixels on lanes)
    """
    cout = o_ref.shape[0]

    # ---- conv as a sum of shifted MXU matmuls (stride-1 conv over the flat map) ----
    acc = jnp.zeros((cout, Mspan), dtype=jnp.float32)
    for t in range(kh * kw):
        dy, dx = t // kw, t % kw
        off = dy * Wp + dx
        xs = x_ref[:, off:off + Mspan]                      # (Cin, Mspan) shifted view
        acc = acc + jnp.dot(w_ref[t], xs,                   # (Cout, Cin) @ (Cin, Mspan)
                            preferred_element_type=jnp.float32)

    # ---- bias + ReLU (garbage "wrap" columns are never selected by `sel`) ----
    acc = jnp.maximum(acc + b_ref[...], 0.0)

    # ---- fused MaxPool2d: separable shift-max, then 0/1 decimation matmul ----
    sy = conv_stride * Wp     # flat offset between vertically adjacent conv outputs
    sx = conv_stride          # flat offset between horizontally adjacent conv outputs
    mv = Mspan - (pool_k - 1) * sy
    v = acc[:, :mv]
    for d in range(1, pool_k):
        v = jnp.maximum(v, acc[:, d * sy:d * sy + mv])
    mh = mv - (pool_k - 1) * sx
    h = v[:, :mh]
    for d in range(1, pool_k):
        h = jnp.maximum(h, v[:, d * sx:d * sx + mh])

    pooled = jnp.dot(h, sel_ref[...], preferred_element_type=jnp.float32)   # (Cout, P)
    o_ref[...] = pooled.astype(o_ref.dtype)


def conv_block_forward(x_nchw, weight, bias,
                       conv_stride, conv_pad, pool_k, pool_stride, pool_pad):
    """Equivalent of Conv_Block.forward (NCHW in / NCHW out), one fused Pallas kernel."""
    # TODO(synk): MaxPool2d with pool_pad > 0 (-inf padding) not implemented in the fused
    # kernel; the module's demo configuration uses pool_pad = 0.
    assert pool_pad == 0, "fused kernel supports pool_pad == 0 only"

    N, Cin, H, W = x_nchw.shape
    Cout, Cin_w, kh, kw = weight.shape
    assert Cin_w == Cin
    Hp, Wp = H + 2 * conv_pad, W + 2 * conv_pad
    Ho = (Hp - kh) // conv_stride + 1
    Wo = (Wp - kw) // conv_stride + 1
    Hpo = (Ho - pool_k) // pool_stride + 1
    Wpo = (Wo - pool_k) // pool_stride + 1
    P = Hpo * Wpo

    # --- glue: pad + flatten spatial (no im2col expansion, no transpose) ---
    xp = jnp.pad(x_nchw, ((0, 0), (0, 0), (conv_pad, conv_pad), (conv_pad, conv_pad)))
    x_flat = xp.reshape(N, Cin, Hp * Wp).astype(jnp.float32)
    Mspan = (Hp - kh + 1) * Wp                     # stride-1 conv positions kept per image
    L = _round_up(Hp * Wp + kw - 1, 128)           # lane-padded flat length (covers max tap shift)
    x_flat = jnp.pad(x_flat, ((0, 0), (0, 0), (0, L - Hp * Wp)))

    # per-tap (Cout, Cin) weight matrices, t = dy*kw + dx
    w_taps = jnp.transpose(weight, (2, 3, 0, 1)).reshape(kh * kw, Cout, Cin)
    w_taps = w_taps.astype(jnp.float32)
    b_col = bias.reshape(Cout, 1).astype(jnp.float32)

    # 0/1 decimation matrix selecting each pool window's top-left position out of the
    # shift-maxed flat map (constant; stays resident in VMEM across grid steps).
    sy, sx = conv_stride * Wp, conv_stride
    mh = Mspan - (pool_k - 1) * sy - (pool_k - 1) * sx
    qp = (jnp.arange(Hpo) * (pool_stride * sy))[:, None] \
        + (jnp.arange(Wpo) * (pool_stride * sx))[None, :]
    qp = qp.reshape(-1)                                                  # (P,)
    sel = (jnp.arange(mh)[:, None] == qp[None, :]).astype(jnp.float32)   # (Mh, P)

    kernel = functools.partial(_fused_conv_block_kernel, kh=kh, kw=kw, Wp=Wp,
                               Mspan=Mspan, conv_stride=conv_stride, pool_k=pool_k)

    out = pl.pallas_call(
        kernel,
        out_shape=jax.ShapeDtypeStruct((N, Cout, P), x_nchw.dtype),
        grid=(N,),
        in_specs=[
            pl.BlockSpec((None, Cin, L), lambda n: (n, 0, 0)),         # per-image flat input
            pl.BlockSpec((kh * kw, Cout, Cin), lambda n: (0, 0, 0)),   # weights   (resident)
            pl.BlockSpec((Cout, 1), lambda n: (0, 0)),                 # bias      (resident)
            pl.BlockSpec((mh, P), lambda n: (0, 0)),                   # decimator (resident)
        ],
        out_specs=pl.BlockSpec((None, Cout, P), lambda n: (n, 0, 0)),
        compiler_params=pltpu.CompilerParams(dimension_semantics=("parallel",)),
    )(x_flat, w_taps, b_col, sel)

    # (N, Cout, Hpo*Wpo) -> NCHW; pure reshape, no transpose.
    return out.reshape(N, Cout, Hpo, Wpo)


def _reference_conv_block(x_nchw, weight, bias,
                          conv_stride, conv_pad, pool_k, pool_stride, pool_pad):
    """Pure-JAX reference (matches PyTorch Conv2d/ReLU/MaxPool2d semantics)."""
    y = lax.conv_general_dilated(
        x_nchw, weight,
        window_strides=(conv_stride, conv_stride),
        padding=[(conv_pad, conv_pad), (conv_pad, conv_pad)],
        dimension_numbers=("NCHW", "OIHW", "NCHW"),
    ) + bias[None, :, None, None]
    y = jnp.maximum(y, 0.0)
    z = lax.reduce_window(
        y, -jnp.inf, lax.max,
        window_dimensions=(1, 1, pool_k, pool_k),
        window_strides=(1, 1, pool_stride, pool_stride),
        padding=[(0, 0), (0, 0), (pool_pad, pool_pad), (pool_pad, pool_pad)],
    )
    return z


if __name__ == "__main__":
    # Module hyper-parameters (small, consistent with Conv_Block's __init__ signature).
    nb_in_channels, nb_out_channels = 4, 8
    conv_k, conv_stride, conv_pad = 3, 1, 1
    pool_k, pool_stride, pool_pad = 2, 2, 0
    N, H, W = 2, 16, 16

    key = jax.random.PRNGKey(0)
    kx, kw_, kb = jax.random.split(key, 3)

    x = jax.random.normal(kx, (N, nb_in_channels, H, W), dtype=jnp.float32)
    # Deterministic synthetic params (Conv2d weight is OIHW, bias is (Cout,)).
    fan_in = nb_in_channels * conv_k * conv_k
    bound = 1.0 / (fan_in ** 0.5)
    weight = jax.random.uniform(
        kw_, (nb_out_channels, nb_in_channels, conv_k, conv_k),
        minval=-bound, maxval=bound, dtype=jnp.float32)
    bias = jax.random.uniform(
        kb, (nb_out_channels,), minval=-bound, maxval=bound, dtype=jnp.float32)

    out = conv_block_forward(x, weight, bias,
                             conv_stride, conv_pad, pool_k, pool_stride, pool_pad)
    out = jax.block_until_ready(out)

    ref = _reference_conv_block(x, weight, bias,
                                conv_stride, conv_pad, pool_k, pool_stride, pool_pad)
    assert out.shape == ref.shape, (out.shape, ref.shape)
    # 1e-4 tolerance: MXU f32 accumulation-order rounding only; layout bugs would be O(1).
    assert jnp.allclose(out, ref, atol=1e-4, rtol=1e-4), "Pallas result mismatch vs reference"

    print("KERNEL_OK")
</pallas_src>

<mosaic_0001>
module attributes {stable_mosaic.version = 11 : i64} {
  func.func @_fused_conv_block_kernel(%arg0: i32, %arg1: memref<1x4x384xf32, #tpu.memory_space<vmem>>, %arg2: memref<9x8x4xf32, #tpu.memory_space<vmem>>, %arg3: memref<8x1xf32, #tpu.memory_space<vmem>>, %arg4: memref<269x64xf32, #tpu.memory_space<vmem>>, %arg5: memref<1x8x64xf32, #tpu.memory_space<vmem>>) attributes {dimension_semantics = [#tpu.dimension_semantics<parallel>], iteration_bounds = array<i64: 2>, scalar_prefetch = 0 : i64, scratch_operands = 0 : i64, tpu.core_type = #tpu.core_type<tc>, window_params = [{transform_indices = @transform_0, window_bounds = array<i64: 1, 4, 384>}, {pipeline_mode = #tpu.pipeline_mode<synchronous>, transform_indices = @transform_1, window_bounds = array<i64: 9, 8, 4>}, {pipeline_mode = #tpu.pipeline_mode<synchronous>, transform_indices = @transform_2, window_bounds = array<i64: 8, 1>}, {pipeline_mode = #tpu.pipeline_mode<synchronous>, transform_indices = @transform_3, window_bounds = array<i64: 269, 64>}, {transform_indices = @transform_4, window_bounds = array<i64: 1, 8, 64>}]} {
    %cst = arith.constant 0.000000e+00 : f32
    %0 = vector.broadcast %cst : f32 to vector<8x288xf32>
    %c0 = arith.constant 0 : index
    %c0_0 = arith.constant 0 : index
    %c0_1 = arith.constant 0 : index
    %1 = vector.load %arg1[%c0, %c0_0, %c0_1] : memref<1x4x384xf32, #tpu.memory_space<vmem>>, vector<1x4x288xf32>
    %2 = vector.shape_cast %1 : vector<1x4x288xf32> to vector<4x288xf32>
    %c0_2 = arith.constant 0 : index
    %c0_3 = arith.constant 0 : index
    %c0_4 = arith.constant 0 : index
    %3 = vector.load %arg2[%c0_2, %c0_3, %c0_4] : memref<9x8x4xf32, #tpu.memory_space<vmem>>, vector<1x8x4xf32>
    %4 = vector.shape_cast %3 : vector<1x8x4xf32> to vector<8x4xf32>
    %cst_5 = arith.constant dense<0.000000e+00> : vector<8x288xf32>
    %5 = tpu.matmul %4, %2, %cst_5 {dimension_numbers = #tpu.dot_dimension_numbers<[1], [0], [0], [1], [0, 0, 1, 1], [], []>} : vector<8x4xf32>, vector<4x288xf32>, vector<8x288xf32> -> vector<8x288xf32>
    %6 = arith.addf %0, %5 : vector<8x288xf32>
    %c0_6 = arith.constant 0 : index
    %c0_7 = arith.constant 0 : index
    %c1 = arith.constant 1 : index
    %7 = vector.load %arg1[%c0_6, %c0_7, %c1] : memref<1x4x384xf32, #tpu.memory_space<vmem>>, vector<1x4x288xf32>
    %8 = vector.shape_cast %7 : vector<1x4x288xf32> to vector<4x288xf32>
    %c1_8 = arith.constant 1 : index
    %c0_9 = arith.constant 0 : index
    %c0_10 = arith.constant 0 : index
    %9 = vector.load %arg2[%c1_8, %c0_9, %c0_10] : memref<9x8x4xf32, #tpu.memory_space<vmem>>, vector<1x8x4xf32>
    %10 = vector.shape_cast %9 : vector<1x8x4xf32> to vector<8x4xf32>
    %cst_11 = arith.constant dense<0.000000e+00> : vector<8x288xf32>
    %11 = tpu.matmul %10, %8, %cst_11 {dimension_numbers = #tpu.dot_dimension_numbers<[1], [0], [0], [1], [0, 0, 1, 1], [], []>} : vector<8x4xf32>, vector<4x288xf32>, vector<8x288xf32> -> vector<8x288xf32>
    %12 = arith.addf %6, %11 : vector<8x288xf32>
    %c0_12 = arith.constant 0 : index
    %c0_13 = arith.constant 0 : index
    %c2 = arith.constant 2 : index
    %13 = vector.load %arg1[%c0_12, %c0_13, %c2] : memref<1x4x384xf32, #tpu.memory_space<vmem>>, vector<1x4x288xf32>
    %14 = vector.shape_cast %13 : vector<1x4x288xf32> to vector<4x288xf32>
    %c2_14 = arith.constant 2 : index
    %c0_15 = arith.constant 0 : index
    %c0_16 = arith.constant 0 : index
    %15 = vector.load %arg2[%c2_14, %c0_15, %c0_16] : memref<9x8x4xf32, #tpu.memory_space<vmem>>, vector<1x8x4xf32>
    %16 = vector.shape_cast %15 : vector<1x8x4xf32> to vector<8x4xf32>
    %cst_17 = arith.constant dense<0.000000e+00> : vector<8x288xf32>
    %17 = tpu.matmul %16, %14, %cst_17 {dimension_numbers = #tpu.dot_dimension_numbers<[1], [0], [0], [1], [0, 0, 1, 1], [], []>} : vector<8x4xf32>, vector<4x288xf32>, vector<8x288xf32> -> vector<8x288xf32>
    %18 = arith.addf %12, %17 : vector<8x288xf32>
    %c0_18 = arith.constant 0 : index
    %c0_19 = arith.constant 0 : index
    %c18 = arith.constant 18 : index
    %19 = vector.load %arg1[%c0_18, %c0_19, %c18] : memref<1x4x384xf32, #tpu.memory_space<vmem>>, vector<1x4x288xf32>
    %20 = vector.shape_cast %19 : vector<1x4x288xf32> to vector<4x288xf32>
    %c3 = arith.constant 3 : index
    %c0_20 = arith.constant 0 : index
    %c0_21 = arith.constant 0 : index
    %21 = vector.load %arg2[%c3, %c0_20, %c0_21] : memref<9x8x4xf32, #tpu.memory_space<vmem>>, vector<1x8x4xf32>
    %22 = vector.shape_cast %21 : vector<1x8x4xf32> to vector<8x4xf32>
    %cst_22 = arith.constant dense<0.000000e+00> : vector<8x288xf32>
    %23 = tpu.matmul %22, %20, %cst_22 {dimension_numbers = #tpu.dot_dimension_numbers<[1], [0], [0], [1], [0, 0, 1, 1], [], []>} : vector<8x4xf32>, vector<4x288xf32>, vector<8x288xf32> -> vector<8x288xf32>
    %24 = arith.addf %18, %23 : vector<8x288xf32>
    %c0_23 = arith.constant 0 : index
    %c0_24 = arith.constant 0 : index
    %c19 = arith.constant 19 : index
    %25 = vector.load %arg1[%c0_23, %c0_24, %c19] : memref<1x4x384xf32, #tpu.memory_space<vmem>>, vector<1x4x288xf32>
    %26 = vector.shape_cast %25 : vector<1x4x288xf32> to vector<4x288xf32>
    %c4 = arith.constant 4 : index
    %c0_25 = arith.constant 0 : index
    %c0_26 = arith.constant 0 : index
    %27 = vector.load %arg2[%c4, %c0_25, %c0_26] : memref<9x8x4xf32, #tpu.memory_space<vmem>>, vector<1x8x4xf32>
    %28 = vector.shape_cast %27 : vector<1x8x4xf32> to vector<8x4xf32>
    %cst_27 = arith.constant dense<0.000000e+00> : vector<8x288xf32>
    %29 = tpu.matmul %28, %26, %cst_27 {dimension_numbers = #tpu.dot_dimension_numbers<[1], [0], [0], [1], [0, 0, 1, 1], [], []>} : vector<8x4xf32>, vector<4x288xf32>, vector<8x288xf32> -> vector<8x288xf32>
    %30 = arith.addf %24, %29 : vector<8x288xf32>
    %c0_28 = arith.constant 0 : index
    %c0_29 = arith.constant 0 : index
    %c20 = arith.constant 20 : index
    %31 = vector.load %arg1[%c0_28, %c0_29, %c20] : memref<1x4x384xf32, #tpu.memory_space<vmem>>, vector<1x4x288xf32>
    %32 = vector.shape_cast %31 : vector<1x4x288xf32> to vector<4x288xf32>
    %c5 = arith.constant 5 : index
    %c0_30 = arith.constant 0 : index
    %c0_31 = arith.constant 0 : index
    %33 = vector.load %arg2[%c5, %c0_30, %c0_31] : memref<9x8x4xf32, #tpu.memory_space<vmem>>, vector<1x8x4xf32>
    %34 = vector.shape_cast %33 : vector<1x8x4xf32> to vector<8x4xf32>
    %cst_32 = arith.constant dense<0.000000e+00> : vector<8x288xf32>
    %35 = tpu.matmul %34, %32, %cst_32 {dimension_numbers = #tpu.dot_dimension_numbers<[1], [0], [0], [1], [0, 0, 1, 1], [], []>} : vector<8x4xf32>, vector<4x288xf32>, vector<8x288xf32> -> vector<8x288xf32>
    %36 = arith.addf %30, %35 : vector<8x288xf32>
    %c0_33 = arith.constant 0 : index
    %c0_34 = arith.constant 0 : index
    %c36 = arith.constant 36 : index
    %37 = vector.load %arg1[%c0_33, %c0_34, %c36] : memref<1x4x384xf32, #tpu.memory_space<vmem>>, vector<1x4x288xf32>
    %38 = vector.shape_cast %37 : vector<1x4x288xf32> to vector<4x288xf32>
    %c6 = arith.constant 6 : index
    %c0_35 = arith.constant 0 : index
    %c0_36 = arith.constant 0 : index
    %39 = vector.load %arg2[%c6, %c0_35, %c0_36] : memref<9x8x4xf32, #tpu.memory_space<vmem>>, vector<1x8x4xf32>
    %40 = vector.shape_cast %39 : vector<1x8x4xf32> to vector<8x4xf32>
    %cst_37 = arith.constant dense<0.000000e+00> : vector<8x288xf32>
    %41 = tpu.matmul %40, %38, %cst_37 {dimension_numbers = #tpu.dot_dimension_numbers<[1], [0], [0], [1], [0, 0, 1, 1], [], []>} : vector<8x4xf32>, vector<4x288xf32>, vector<8x288xf32> -> vector<8x288xf32>
    %42 = arith.addf %36, %41 : vector<8x288xf32>
    %c0_38 = arith.constant 0 : index
    %c0_39 = arith.constant 0 : index
    %c37 = arith.constant 37 : index
    %43 = vector.load %arg1[%c0_38, %c0_39, %c37] : memref<1x4x384xf32, #tpu.memory_space<vmem>>, vector<1x4x288xf32>
    %44 = vector.shape_cast %43 : vector<1x4x288xf32> to vector<4x288xf32>
    %c7 = arith.constant 7 : index
    %c0_40 = arith.constant 0 : index
    %c0_41 = arith.constant 0 : index
    %45 = vector.load %arg2[%c7, %c0_40, %c0_41] : memref<9x8x4xf32, #tpu.memory_space<vmem>>, vector<1x8x4xf32>
    %46 = vector.shape_cast %45 : vector<1x8x4xf32> to vector<8x4xf32>
    %cst_42 = arith.constant dense<0.000000e+00> : vector<8x288xf32>
    %47 = tpu.matmul %46, %44, %cst_42 {dimension_numbers = #tpu.dot_dimension_numbers<[1], [0], [0], [1], [0, 0, 1, 1], [], []>} : vector<8x4xf32>, vector<4x288xf32>, vector<8x288xf32> -> vector<8x288xf32>
    %48 = arith.addf %42, %47 : vector<8x288xf32>
    %c0_43 = arith.constant 0 : index
    %c0_44 = arith.constant 0 : index
    %c38 = arith.constant 38 : index
    %49 = vector.load %arg1[%c0_43, %c0_44, %c38] : memref<1x4x384xf32, #tpu.memory_space<vmem>>, vector<1x4x288xf32>
    %50 = vector.shape_cast %49 : vector<1x4x288xf32> to vector<4x288xf32>
    %c8 = arith.constant 8 : index
    %c0_45 = arith.constant 0 : index
    %c0_46 = arith.constant 0 : index
    %51 = vector.load %arg2[%c8, %c0_45, %c0_46] : memref<9x8x4xf32, #tpu.memory_space<vmem>>, vector<1x8x4xf32>
    %52 = vector.shape_cast %51 : vector<1x8x4xf32> to vector<8x4xf32>
    %cst_47 = arith.constant dense<0.000000e+00> : vector<8x288xf32>
    %53 = tpu.matmul %52, %50, %cst_47 {dimension_numbers = #tpu.dot_dimension_numbers<[1], [0], [0], [1], [0, 0, 1, 1], [], []>} : vector<8x4xf32>, vector<4x288xf32>, vector<8x288xf32> -> vector<8x288xf32>
    %54 = arith.addf %48, %53 : vector<8x288xf32>
    %c0_48 = arith.constant 0 : index
    %c0_49 = arith.constant 0 : index
    %55 = vector.load %arg3[%c0_48, %c0_49] : memref<8x1xf32, #tpu.memory_space<vmem>>, vector<8x1xf32>
    %56 = vector.broadcast %55 : vector<8x1xf32> to vector<8x288xf32>
    %57 = arith.addf %54, %56 : vector<8x288xf32>
    %cst_50 = arith.constant 0.000000e+00 : f32
    %58 = vector.broadcast %cst_50 : f32 to vector<8x288xf32>
    %59 = arith.maximumf %57, %58 : vector<8x288xf32>
    %60 = vector.extract_strided_slice %59 {offsets = [0, 0], sizes = [8, 270], strides = [1, 1]} : vector<8x288xf32> to vector<8x270xf32>
    %61 = vector.extract_strided_slice %59 {offsets = [0, 18], sizes = [8, 270], strides = [1, 1]} : vector<8x288xf32> to vector<8x270xf32>
    %62 = arith.maximumf %60, %61 : vector<8x270xf32>
    %63 = vector.extract_strided_slice %62 {offsets = [0, 0], sizes = [8, 269], strides = [1, 1]} : vector<8x270xf32> to vector<8x269xf32>
    %64 = vector.extract_strided_slice %62 {offsets = [0, 1], sizes = [8, 269], strides = [1, 1]} : vector<8x270xf32> to vector<8x269xf32>
    %65 = arith.maximumf %63, %64 : vector<8x269xf32>
    %c0_51 = arith.constant 0 : index
    %c0_52 = arith.constant 0 : index
    %66 = vector.load %arg4[%c0_51, %c0_52] : memref<269x64xf32, #tpu.memory_space<vmem>>, vector<269x64xf32>
    %cst_53 = arith.constant dense<0.000000e+00> : vector<8x64xf32>
    %67 = tpu.matmul %65, %66, %cst_53 {dimension_numbers = #tpu.dot_dimension_numbers<[1], [0], [0], [1], [0, 0, 1, 1], [], []>} : vector<8x269xf32>, vector<269x64xf32>, vector<8x64xf32> -> vector<8x64xf32>
    %c0_54 = arith.constant 0 : index
    %c0_55 = arith.constant 0 : index
    %c0_56 = arith.constant 0 : index
    %68 = vector.load %arg5[%c0_54, %c0_55, %c0_56] : memref<1x8x64xf32, #tpu.memory_space<vmem>>, vector<1x8x64xf32>
    %69 = vector.shape_cast %68 : vector<1x8x64xf32> to vector<8x64xf32>
    %70 = vector.shape_cast %67 : vector<8x64xf32> to vector<1x8x64xf32>
    tpu.vector_store %arg5[%c0_54, %c0_55, %c0_56], %70 {strides = array<i32>} : memref<1x8x64xf32, #tpu.memory_space<vmem>>, vector<1x8x64xf32>,
    return
  }
  func.func @transform_0(%arg0: i32) -> (i32, i32, i32) {
    %c0_i32 = arith.constant 0 : i32
    %c0_i32_0 = arith.constant 0 : i32
    %c0_i32_1 = arith.constant 0 : i32
    return %arg0, %c0_i32, %c0_i32_0 : i32, i32, i32
  }
  func.func @transform_1(%arg0: i32) -> (i32, i32, i32) {
    %c0_i32 = arith.constant 0 : i32
    %c0_i32_0 = arith.constant 0 : i32
    %c0_i32_1 = arith.constant 0 : i32
    %c0_i32_2 = arith.constant 0 : i32
    return %c0_i32, %c0_i32_0, %c0_i32_1 : i32, i32, i32
  }
  func.func @transform_2(%arg0: i32) -> (i32, i32) {
    %c0_i32 = arith.constant 0 : i32
    %c0_i32_0 = arith.constant 0 : i32
    %c0_i32_1 = arith.constant 0 : i32
    return %c0_i32, %c0_i32_0 : i32, i32
  }
  func.func @transform_3(%arg0: i32) -> (i32, i32) {
    %c0_i32 = arith.constant 0 : i32
    %c0_i32_0 = arith.constant 0 : i32
    %c0_i32_1 = arith.constant 0 : i32
    return %c0_i32, %c0_i32_0 : i32, i32
  }
  func.func @transform_4(%arg0: i32) -> (i32, i32, i32) {
    %c0_i32 = arith.constant 0 : i32
    %c0_i32_0 = arith.constant 0 : i32
    %c0_i32_1 = arith.constant 0 : i32
    return %arg0, %c0_i32, %c0_i32_0 : i32, i32, i32
  }
}

</mosaic_0001>

<llo_original>
// kernel: tpu_custom_call.1
$region0: #{tpu_custom_call.1}
  #allocation0 [shape = 'u32[]', space=smem, size = 0x4, offset = 0x4, fixed_abs, tag = 'smem constant byte address 0x4 - core index']
  #allocation1 [shape = 'u32[72,128]{1,0:T(1,128)}', space=vmem, size = 0x9000, scoped, tag = 'internal scratch']
  %s0 = inlined_call_operand.vmem [shape: f32[2,4,384], index: 0, kind: input, shape index: {}]
  %s1 = inlined_call_operand.vmem [shape: f32[9,8,4], index: 1, kind: input, shape index: {}]
  %s2 = inlined_call_operand.vmem [shape: f32[8,1], index: 2, kind: input, shape index: {}]
  %s3 = inlined_call_operand.vmem [shape: f32[269,64], index: 3, kind: input, shape index: {}]
  %s4 = inlined_call_operand.hbm [shape: f32[2,8,64], index: 4, kind: output, shape index: {}]
  %s5 = sld [smem:[#allocation0]]
  $region49: #{tpu_custom_call.1} parent=0
    _
  %s7 = ssub.s32 1, %s5
  %s8 = scalar_select 0, %s7, %s5
  $region1: #{tpu_custom_call.1} parent=0
    #allocation2 [shape = 'u8[8192]{0}', space=vmem, size = 0x2000, scoped, tag = 'output window, operand 0']
    #allocation3 [shape = 's32[2]{0}', space=sflag, size = 0x8, scoped, tag = 'scoped memory for tpu_custom_call.1']
    %9 = vsyncpa [#allocation3], 0
    %s10 = scalar_lea.sflag [#allocation3], 1
    %11 = vsyncpa %s10, 0
    loop: start=0, step=1, limit=4
    $region2: #{tpu_custom_call.1} parent=1 // loop_pre_header
      _
    $region3: #{tpu_custom_call.1} parent=1 // loop_header
      %s13 = sphi 0, %s17
      %p14 = scmp.ge.s32.totalorder %s13, 4
      %s23 = sphi 0, %s25
      %s26 = sphi 0, %s23
      %s27 = sphi 0, %s26
      %s43 = sphi 0, %s27
      %s47 = sphi 0, %s47
      %s49 = sphi 0, %s47
      %s50 = sphi 0, %s49
      %s64 = sphi 0, %s50
      %s68 = sphi 0, %s68
      %s70 = sphi 0, %s68
      %s71 = sphi 0, %s70
      %s85 = sphi 0, %s71
      %s89 = sphi 0, %s89
      %s91 = sphi 0, %s89
      %s92 = sphi 0, %s91
      %s106 = sphi 0, %s92
      %s112 = sphi 0, %s114
      %s115 = sphi 0, %s112
      %s116 = sphi 0, %s115
      %s132 = sphi 0, %s116
    $region4: #{tpu_custom_call.1} parent=1 // loop_header_branch
      %16 = sbr.rel (%p14) target = $region8
    $region5: #{tpu_custom_call.1} parent=1 // loop_body
      %s18 = ssub.s32 %s13, 1
      %s19 = ssub.s32 %s13, 2
      %s20 = sadd.s32 %s13, 1
      %s21 = ssub.s32 %s13, %s20
      %p22 = scmp.eq.s32.totalorder %s21, 0
      %s24 = sadd.s32 %s23, 1
      %s25 = scalar_select %p22, %s23, %s24
      %p28 = pneg %p22
      %p29 = scmp.eq.s32.totalorder %s13, 1
      %p30 = por %p28, %p29
      %p31 = scmp.ne.s32.totalorder %s23, %s26
      %p32 = scmp.eq.s32.totalorder %s13, 0
      %p33 = por %p31, %p32
      %p34 = scmp.ne.s32.totalorder %s23, %s26
      %p35 = scmp.eq.s32.totalorder %s18, 1
      %p36 = por %p34, %p35
      %p37 = scmp.ne.s32.totalorder %s26, %s27
      %p38 = scmp.eq.s32.totalorder %s18, 0
      %p39 = por %p37, %p38
      %p40 = scmp.ne.s32.totalorder %s26, %s27
      %p41 = scmp.eq.s32.totalorder %s19, 1
      %p42 = por %p40, %p41
      %p44 = scmp.ne.s32.totalorder %s27, %s43
      %p45 = scmp.eq.s32.totalorder %s19, 0
      %p46 = por %p44, %p45
      %s48 = sadd.s32 %s47, 1
      %p51 = scmp.eq.s32.totalorder %s13, 1
      %p52 = scmp.ne.s32.totalorder %s47, %s49
      %p53 = scmp.eq.s32.totalorder %s13, 0
      %p54 = por %p52, %p53
      %p55 = scmp.ne.s32.totalorder %s47, %s49
      %p56 = scmp.eq.s32.totalorder %s18, 1
      %p57 = por %p55, %p56
      %p58 = scmp.ne.s32.totalorder %s49, %s50
      %p59 = scmp.eq.s32.totalorder %s18, 0
      %p60 = por %p58, %p59
      %p61 = scmp.ne.s32.totalorder %s49, %s50
      %p62 = scmp.eq.s32.totalorder %s19, 1
      %p63 = por %p61, %p62
      %p65 = scmp.ne.s32.totalorder %s50, %s64
      %p66 = scmp.eq.s32.totalorder %s19, 0
      %p67 = por %p65, %p66
      %s69 = sadd.s32 %s68, 1
      %p72 = scmp.eq.s32.totalorder %s13, 1
      %p73 = scmp.ne.s32.totalorder %s68, %s70
      %p74 = scmp.eq.s32.totalorder %s13, 0
      %p75 = por %p73, %p74
      %p76 = scmp.ne.s32.totalorder %s68, %s70
      %p77 = scmp.eq.s32.totalorder %s18, 1
      %p78 = por %p76, %p77
      %p79 = scmp.ne.s32.totalorder %s70, %s71
      %p80 = scmp.eq.s32.totalorder %s18, 0
      %p81 = por %p79, %p80
      %p82 = scmp.ne.s32.totalorder %s70, %s71
      %p83 = scmp.eq.s32.totalorder %s19, 1
      %p84 = por %p82, %p83
      %p86 = scmp.ne.s32.totalorder %s71, %s85
      %p87 = scmp.eq.s32.totalorder %s19, 0
      %p88 = por %p86, %p87
      %s90 = sadd.s32 %s89, 1
      %p93 = scmp.eq.s32.totalorder %s13, 1
      %p94 = scmp.ne.s32.totalorder %s89, %s91
      %p95 = scmp.eq.s32.totalorder %s13, 0
      %p96 = por %p94, %p95
      %p97 = scmp.ne.s32.totalorder %s89, %s91
      %p98 = scmp.eq.s32.totalorder %s18, 1
      %p99 = por %p97, %p98
      %p100 = scmp.ne.s32.totalorder %s91, %s92
      %p101 = scmp.eq.s32.totalorder %s18, 0
      %p102 = por %p100, %p101
      %p103 = scmp.ne.s32.totalorder %s91, %s92
      %p104 = scmp.eq.s32.totalorder %s19, 1
      %p105 = por %p103, %p104
      %p107 = scmp.ne.s32.totalorder %s92, %s106
      %p108 = scmp.eq.s32.totalorder %s19, 0
      %p109 = por %p107, %p108
      %s110 = ssub.s32 %s13, %s20
      %p111 = scmp.eq.s32.totalorder %s110, 0
      %s113 = sadd.s32 %s112, 1
      %s114 = scalar_select %p111, %s112, %s113
      %p117 = pneg %p111
      %p118 = scmp.eq.s32.totalorder %s13, 1
      %p119 = por %p117, %p118
      %p120 = scmp.ne.s32.totalorder %s112, %s115
      %p121 = scmp.eq.s32.totalorder %s13, 0
      %p122 = por %p120, %p121
      %p123 = scmp.ne.s32.totalorder %s112, %s115
      %p124 = scmp.eq.s32.totalorder %s18, 1
      %p125 = por %p123, %p124
      %p126 = scmp.ne.s32.totalorder %s115, %s116
      %p127 = scmp.eq.s32.totalorder %s18, 0
      %p128 = por %p126, %p127
      %p129 = scmp.ne.s32.totalorder %s115, %s116
      %p130 = scmp.eq.s32.totalorder %s19, 1
      %p131 = por %p129, %p130
      %p133 = scmp.ne.s32.totalorder %s116, %s132
      %p134 = scmp.eq.s32.totalorder %s19, 0
      %p135 = por %p133, %p134
      %p136 = scmp.le.s32.totalorder 1, %s13
      %p137 = scmp.lt.s32.totalorder %s13, 3
      %p138 = pnand %p136, %p137
      %p139 = pneg %p138
      // Predicated region
      $region9: #{tpu_custom_call.1} parent=5 // pred_check
        _
      $region10: #{tpu_custom_call.1} parent=5 // pred_check_branch
        %141 = sbr.rel (%p138) target = $region12
      $region11: #{tpu_custom_call.1} parent=5 // pred_region
        %s142 = ssub.s32 %s13, 1
        // Predicated region
        $region13: #{tpu_custom_call.1} parent=11 // pred_check
          %p143 = pneg %p60
        $region14: #{tpu_custom_call.1} parent=11 // pred_check_branch
          %145 = sbr.rel (%p143) target = $region16
        $region15: #{tpu_custom_call.1} parent=11 // pred_region
          _
        $region16: #{tpu_custom_call.1} parent=11 // pred_fallthru
          _
        // Predicated region
        $region17: #{tpu_custom_call.1} parent=11 // pred_check
          %p146 = pneg %p81
        $region18: #{tpu_custom_call.1} parent=11 // pred_check_branch
          %148 = sbr.rel (%p146) target = $region20
        $region19: #{tpu_custom_call.1} parent=11 // pred_region
          _
        $region20: #{tpu_custom_call.1} parent=11 // pred_fallthru
          _
        // Predicated region
        $region21: #{tpu_custom_call.1} parent=11 // pred_check
          %p149 = pneg %p102
        $region22: #{tpu_custom_call.1} parent=11 // pred_check_branch
          %151 = sbr.rel (%p149) target = $region24
        $region23: #{tpu_custom_call.1} parent=11 // pred_region
          _
        $region24: #{tpu_custom_call.1} parent=11 // pred_fallthru
          _
      $region12: #{tpu_custom_call.1} parent=5 // pred_fallthru
        _
      %p152 = scmp.lt.s32.totalorder %s13, 2
      // Predicated region
      $region25: #{tpu_custom_call.1} parent=5 // pred_check
        %p153 = pneg %p152
      $region26: #{tpu_custom_call.1} parent=5 // pred_check_branch
        %155 = sbr.rel (%p153) target = $region28
      $region27: #{tpu_custom_call.1} parent=5 // pred_region
        // Predicated region
        $region29: #{tpu_custom_call.1} parent=27 // pred_check
          %p156 = pneg %p33
        $region30: #{tpu_custom_call.1} parent=27 // pred_check_branch
          %158 = sbr.rel (%p156) target = $region32
        $region31: #{tpu_custom_call.1} parent=27 // pred_region
          %p159 = scmp.lt.s32.totalorder %s13, 1
          %s160 = scalar_select %p159, %s13, 1
          %s161 = smul.addr %s160, 3
          %s162 = smul.addr %s161, 4
          %s163 = scalar_lea.vmem %s0, %s162
        $region32: #{tpu_custom_call.1} parent=27 // pred_fallthru
          _
      $region28: #{tpu_custom_call.1} parent=5 // pred_fallthru
        _
      %p164 = scmp.le.s32.totalorder 1, %s13
      %p165 = scmp.lt.s32.totalorder %s13, 3
      %p166 = pnand %p164, %p165
      %p167 = pneg %p166
      // Predicated region
      $region33: #{tpu_custom_call.1} parent=5 // pred_check
        _
      $region34: #{tpu_custom_call.1} parent=5 // pred_check_branch
        %169 = sbr.rel (%p166) target = $region36
      $region35: #{tpu_custom_call.1} parent=5 // pred_region
        %s170 = ssub.s32 %s13, 1
        %p171 = scmp.lt.s32.totalorder %s18, 1
        %s172 = scalar_select %p171, %s18, 1
        %s173 = smul.addr %s172, 3
        %s174 = smul.addr %s173, 4
        %s175 = scalar_lea.vmem %s0, %s174
        %p176 = pneg %p39
        %p177 = pneg %p36
        %p178 = pneg %p60
        %p179 = pneg %p57
        %p180 = pneg %p81
        %p181 = pneg %p78
        %p182 = pneg %p102
        %p183 = pneg %p99
        %p184 = pneg %p128
        %p185 = pneg %p125
        %s186 = sand.u32 %s115, 1
        %s187 = scalar_lea.sflag [#allocation3], %s186
        %s188 = sand.u32 %s115, 1
        %s189 = smul.addr %s188, 8
        %s190 = scalar_lea.vmem [#allocation2], %s189
        %p191 = scmp.lt.s32.totalorder %s18, 1
        %s192 = scalar_select %p191, %s18, 1
        %s193 = smul.addr %s192, 3
        %s194 = smul.addr %s193, 4
        %s195 = scalar_lea.vmem %s0, %s194
        %v196 = vld [vmem:[%s195] sm:$0xff]
        %v197 = vld [vmem:[%s195 + $0x8] sm:$0xf]
        %v198 = vld [vmem:[%s1] sm:$0xff]
        %s199 = scalar_lea.vmem %s1, 8
        %v200 = vld [vmem:[%s199] sm:$0xff]
        %203 = vst [vmem:[#allocation1] ss:$2 sm:$0xff] %v196
        %s204 = scalar_lea.vmem [#allocation1], 16
        %205 = vst [vmem:[%s204] ss:$2 sm:$0xff] %v197
        %v206 = vld.sshfl [vmem:[#allocation1] sm:$0xff pattern:$0x75316420]
        %v207 = vld.sshfl [vmem:[#allocation1 + $0x8] sm:$0xff pattern:$0x75316420]
        %v208 = vld.sshfl [vmem:[#allocation1 + $0x10] sm:$0xff pattern:$0x75316420]
        %209 = vrot.lane.b32.xlu0 %v206, 127
        %v210 = vpop.permute.xlu0 %209
        %211 = vrot.lane.b32.xlu0 %v207, 127
        %v212 = vpop.permute.xlu0 %211
        %213 = vrot.lane.b32.xlu0 %v208, 127
        %v214 = vpop.permute.xlu0 %213
        %vm215 = vcmask 1039360
        %v216 = vsel %vm215, %v210, %v212
        %v217 = vsel %vm215, %v212, %v214
        %vm218 = vcmask 31744
        %v220 = vsel %vm218, %v200, 0
        %vm222 = vcmask 1043456
        %v223 = vsel %vm222, %v216, 0
        %v225 = vsel %vm222, %v217, 0
        %v227 = vsel %vm222, %v214, 0
        %229 = vmatpush.msra.mxu0 0.0
        %230 = vmatpush.msra.mxu0 0.0
        %231 = vmatpush.msra.mxu0 0.0
        %232 = vmatpush.msra.mxu0 0.0
        %233 = vmatpush.msra.mxu0 0.0
        %234 = vmatpush.msra.mxu0 0.0
        %235 = vmatpush.msra.mxu0 0.0
        %236 = vmatpush.msra.mxu0 0.0
        %237 = vmatpush.msra.mxu0 0.0
        %238 = vmatpush.msra.mxu0 0.0
        %239 = vmatpush.msra.mxu0 0.0
        %240 = vmatpush.msra.mxu0 0.0
        %241 = vmatpush.msra.mxu0 0.0
        %242 = vmatpush.msra.mxu0 0.0
        %243 = vmatpush.msra.mxu0 0.0
        %244 = vmatpush.msra.mxu0 %v223
        %245 = vmatmul.f32.gmra.mxu0 %v220
        %v246 = vpop.f32.mrf.mxu0
        %v247 = vadd.f32 0.0, %v246
        %248 = vdwg.mxu0
        %249 = vmatpush.msra.mxu0 0.0
        %250 = vmatpush.msra.mxu0 0.0
        %251 = vmatpush.msra.mxu0 0.0
        %252 = vmatpush.msra.mxu0 0.0
        %253 = vmatpush.msra.mxu0 0.0
        %254 = vmatpush.msra.mxu0 0.0
        %255 = vmatpush.msra.mxu0 0.0
        %256 = vmatpush.msra.mxu0 0.0
        %257 = vmatpush.msra.mxu0 0.0
        %258 = vmatpush.msra.mxu0 0.0
        %259 = vmatpush.msra.mxu0 0.0
        %260 = vmatpush.msra.mxu0 0.0
        %261 = vmatpush.msra.mxu0 0.0
        %262 = vmatpush.msra.mxu0 0.0
        %263 = vmatpush.msra.mxu0 0.0
        %264 = vmatpush.msra.mxu0 %v225
        %265 = vmatmul.f32.gmra.mxu0 %v220
        %v266 = vpop.f32.mrf.mxu0
        %v267 = vadd.f32 0.0, %v266
        %268 = vdwg.mxu0
        %269 = vmatpush.msra.mxu0 0.0
        %270 = vmatpush.msra.mxu0 0.0
        %271 = vmatpush.msra.mxu0 0.0
        %272 = vmatpush.msra.mxu0 0.0
        %273 = vmatpush.msra.mxu0 0.0
        %274 = vmatpush.msra.mxu0 0.0
        %275 = vmatpush.msra.mxu0 0.0
        %276 = vmatpush.msra.mxu0 0.0
        %277 = vmatpush.msra.mxu0 0.0
        %278 = vmatpush.msra.mxu0 0.0
        %279 = vmatpush.msra.mxu0 0.0
        %280 = vmatpush.msra.mxu0 0.0
        %281 = vmatpush.msra.mxu0 0.0
        %282 = vmatpush.msra.mxu0 0.0
        %283 = vmatpush.msra.mxu0 0.0
        %284 = vmatpush.msra.mxu0 %v227
        %285 = vmatmul.f32.gmra.mxu0 %v220
        %v286 = vpop.f32.mrf.mxu0
        %v287 = vadd.f32 0.0, %v286
        %288 = vdwg.mxu0
        %289 = vst [vmem:[#allocation1] ss:$2 sm:$0xff] %v196
        %s290 = scalar_lea.vmem [#allocation1], 16
        %291 = vst [vmem:[%s290] ss:$2 sm:$0xff] %v197
        %v292 = vld.sshfl [vmem:[#allocation1] sm:$0xff pattern:$0x75316420]
        %v293 = vld.sshfl [vmem:[#allocation1 + $0x8] sm:$0xff pattern:$0x75316420]
        %v294 = vld.sshfl [vmem:[#allocation1 + $0x10] sm:$0xff pattern:$0x75316420]
        %v296 = vsel %vm218, %v198, 0
        %v298 = vsel %vm222, %v292, 0
        %v300 = vsel %vm222, %v293, 0
        %v302 = vsel %vm222, %v294, 0
        %304 = vmatpush.msra.mxu0 0.0
        %305 = vmatpush.msra.mxu0 0.0
        %306 = vmatpush.msra.mxu0 0.0
        %307 = vmatpush.msra.mxu0 0.0
        %308 = vmatpush.msra.mxu0 0.0
        %309 = vmatpush.msra.mxu0 0.0
        %310 = vmatpush.msra.mxu0 0.0
        %311 = vmatpush.msra.mxu0 0.0
        %312 = vmatpush.msra.mxu0 0.0
        %313 = vmatpush.msra.mxu0 0.0
        %314 = vmatpush.msra.mxu0 0.0
        %315 = vmatpush.msra.mxu0 0.0
        %316 = vmatpush.msra.mxu0 0.0
        %317 = vmatpush.msra.mxu0 0.0
        %318 = vmatpush.msra.mxu0 0.0
        %319 = vmatpush.msra.mxu0 %v298
        %320 = vmatmul.f32.gmra.mxu0 %v296
        %v321 = vpop.f32.mrf.mxu0
        %v322 = vadd.f32 %v247, %v321
        %323 = vdwg.mxu0
        %324 = vmatpush.msra.mxu0 0.0
        %325 = vmatpush.msra.mxu0 0.0
        %326 = vmatpush.msra.mxu0 0.0
        %327 = vmatpush.msra.mxu0 0.0
        %328 = vmatpush.msra.mxu0 0.0
        %329 = vmatpush.msra.mxu0 0.0
        %330 = vmatpush.msra.mxu0 0.0
        %331 = vmatpush.msra.mxu0 0.0
        %332 = vmatpush.msra.mxu0 0.0
        %333 = vmatpush.msra.mxu0 0.0
        %334 = vmatpush.msra.mxu0 0.0
        %335 = vmatpush.msra.mxu0 0.0
        %336 = vmatpush.msra.mxu0 0.0
        %337 = vmatpush.msra.mxu0 0.0
        %338 = vmatpush.msra.mxu0 0.0
        %339 = vmatpush.msra.mxu0 %v300
        %340 = vmatmul.f32.gmra.mxu0 %v296
        %v341 = vpop.f32.mrf.mxu0
        %v342 = vadd.f32 %v267, %v341
        %343 = vdwg.mxu0
        %344 = vmatpush.msra.mxu0 0.0
        %345 = vmatpush.msra.mxu0 0.0
        %346 = vmatpush.msra.mxu0 0.0
        %347 = vmatpush.msra.mxu0 0.0
        %348 = vmatpush.msra.mxu0 0.0
        %349 = vmatpush.msra.mxu0 0.0
        %350 = vmatpush.msra.mxu0 0.0
        %351 = vmatpush.msra.mxu0 0.0
        %352 = vmatpush.msra.mxu0 0.0
        %353 = vmatpush.msra.mxu0 0.0
        %354 = vmatpush.msra.mxu0 0.0
        %355 = vmatpush.msra.mxu0 0.0
        %356 = vmatpush.msra.mxu0 0.0
        %357 = vmatpush.msra.mxu0 0.0
        %358 = vmatpush.msra.mxu0 0.0
        %359 = vmatpush.msra.mxu0 %v302
        %360 = vmatmul.f32.gmra.mxu0 %v296
        %v361 = vpop.f32.mrf.mxu0
        %v362 = vadd.f32 %v287, %v361
        %363 = vdwg.mxu0
        %v364 = vld [vmem:[%s195] sm:$0xff]
        %v365 = vld [vmem:[%s195 + $0x8] sm:$0xf]
        %s366 = scalar_lea.vmem %s1, 16
        %v367 = vld [vmem:[%s366] sm:$0xff]
        %370 = vst [vmem:[#allocation1] ss:$2 sm:$0xff] %v364
        %s371 = scalar_lea.vmem [#allocation1], 16
        %372 = vst [vmem:[%s371] ss:$2 sm:$0xff] %v365
        %v373 = vld.sshfl [vmem:[#allocation1] sm:$0xff pattern:$0x75316420]
        %v374 = vld.sshfl [vmem:[#allocation1 + $0x8] sm:$0xff pattern:$0x75316420]
        %v375 = vld.sshfl [vmem:[#allocation1 + $0x10] sm:$0xff pattern:$0x75316420]
        %376 = vrot.lane.b32.xlu0 %v373, 126
        %v377 = vpop.permute.xlu0 %376
        %378 = vrot.lane.b32.xlu0 %v374, 126
        %v379 = vpop.permute.xlu0 %378
        %380 = vrot.lane.b32.xlu0 %v375, 126
        %v381 = vpop.permute.xlu0 %380
        %vm382 = vcmask 1031168
        %v383 = vsel %vm382, %v377, %v379
        %v384 = vsel %vm382, %v379, %v381
        %v386 = vsel %vm218, %v367, 0
        %v388 = vsel %vm222, %v383, 0
        %v390 = vsel %vm222, %v384, 0
        %v392 = vsel %vm222, %v381, 0
        %394 = vmatpush.msra.mxu0 0.0
        %395 = vmatpush.msra.mxu0 0.0
        %396 = vmatpush.msra.mxu0 0.0
        %397 = vmatpush.msra.mxu0 0.0
        %398 = vmatpush.msra.mxu0 0.0
        %399 = vmatpush.msra.mxu0 0.0
        %400 = vmatpush.msra.mxu0 0.0
        %401 = vmatpush.msra.mxu0 0.0
        %402 = vmatpush.msra.mxu0 0.0
        %403 = vmatpush.msra.mxu0 0.0
        %404 = vmatpush.msra.mxu0 0.0
        %405 = vmatpush.msra.mxu0 0.0
        %406 = vmatpush.msra.mxu0 0.0
        %407 = vmatpush.msra.mxu0 0.0
        %408 = vmatpush.msra.mxu0 0.0
        %409 = vmatpush.msra.mxu0 %v388
        %410 = vmatmul.f32.gmra.mxu0 %v386
        %v411 = vpop.f32.mrf.mxu0
        %v412 = vadd.f32 0.0, %v411
        %413 = vdwg.mxu0
        %414 = vmatpush.msra.mxu0 0.0
        %415 = vmatpush.msra.mxu0 0.0
        %416 = vmatpush.msra.mxu0 0.0
        %417 = vmatpush.msra.mxu0 0.0
        %418 = vmatpush.msra.mxu0 0.0
        %419 = vmatpush.msra.mxu0 0.0
        %420 = vmatpush.msra.mxu0 0.0
        %421 = vmatpush.msra.mxu0 0.0
        %422 = vmatpush.msra.mxu0 0.0
        %423 = vmatpush.msra.mxu0 0.0
        %424 = vmatpush.msra.mxu0 0.0
        %425 = vmatpush.msra.mxu0 0.0
        %426 = vmatpush.msra.mxu0 0.0
        %427 = vmatpush.msra.mxu0 0.0
        %428 = vmatpush.msra.mxu0 0.0
        %429 = vmatpush.msra.mxu0 %v390
        %430 = vmatmul.f32.gmra.mxu0 %v386
        %v431 = vpop.f32.mrf.mxu0
        %v432 = vadd.f32 0.0, %v431
        %433 = vdwg.mxu0
        %434 = vmatpush.msra.mxu0 0.0
        %435 = vmatpush.msra.mxu0 0.0
        %436 = vmatpush.msra.mxu0 0.0
        %437 = vmatpush.msra.mxu0 0.0
        %438 = vmatpush.msra.mxu0 0.0
        %439 = vmatpush.msra.mxu0 0.0
        %440 = vmatpush.msra.mxu0 0.0
        %441 = vmatpush.msra.mxu0 0.0
        %442 = vmatpush.msra.mxu0 0.0
        %443 = vmatpush.msra.mxu0 0.0
        %444 = vmatpush.msra.mxu0 0.0
        %445 = vmatpush.msra.mxu0 0.0
        %446 = vmatpush.msra.mxu0 0.0
        %447 = vmatpush.msra.mxu0 0.0
        %448 = vmatpush.msra.mxu0 0.0
        %449 = vmatpush.msra.mxu0 %v392
        %450 = vmatmul.f32.gmra.mxu0 %v386
        %v451 = vpop.f32.mrf.mxu0
        %v452 = vadd.f32 0.0, %v451
        %453 = vdwg.mxu0
        %v454 = vadd.f32 %v322, %v412
        %v455 = vadd.f32 %v342, %v432
        %v456 = vadd.f32 %v362, %v452
        %v457 = vld [vmem:[%s195] sm:$0xff]
        %v458 = vld [vmem:[%s195 + $0x8] sm:$0xf]
        %s459 = scalar_lea.vmem %s1, 24
        %v460 = vld [vmem:[%s459] sm:$0xff]
        %463 = vst [vmem:[#allocation1] ss:$2 sm:$0xff] %v457
        %s464 = scalar_lea.vmem [#allocation1], 16
        %465 = vst [vmem:[%s464] ss:$2 sm:$0xff] %v458
        %v466 = vld.sshfl [vmem:[#allocation1] sm:$0xff pattern:$0x75316420]
        %v467 = vld.sshfl [vmem:[#allocation1 + $0x8] sm:$0xff pattern:$0x75316420]
        %v468 = vld.sshfl [vmem:[#allocation1 + $0x10] sm:$0xff pattern:$0x75316420]
        %469 = vrot.lane.b32.xlu0 %v466, 110
        %v470 = vpop.permute.xlu0 %469
        %471 = vrot.lane.b32.xlu0 %v467, 110
        %v472 = vpop.permute.xlu0 %471
        %473 = vrot.lane.b32.xlu0 %v468, 110
        %v474 = vpop.permute.xlu0 %473
        %vm475 = vcmask 900096
        %v476 = vsel %vm475, %v470, %v472
        %v477 = vsel %vm475, %v472, %v474
        %v479 = vsel %vm218, %v460, 0
        %v481 = vsel %vm222, %v476, 0
        %v483 = vsel %vm222, %v477, 0
        %v485 = vsel %vm222, %v474, 0
        %487 = vmatpush.msra.mxu0 0.0
        %488 = vmatpush.msra.mxu0 0.0
        %489 = vmatpush.msra.mxu0 0.0
        %490 = vmatpush.msra.mxu0 0.0
        %491 = vmatpush.msra.mxu0 0.0
        %492 = vmatpush.msra.mxu0 0.0
        %493 = vmatpush.msra.mxu0 0.0
        %494 = vmatpush.msra.mxu0 0.0
        %495 = vmatpush.msra.mxu0 0.0
        %496 = vmatpush.msra.mxu0 0.0
        %497 = vmatpush.msra.mxu0 0.0
        %498 = vmatpush.msra.mxu0 0.0
        %499 = vmatpush.msra.mxu0 0.0
        %500 = vmatpush.msra.mxu0 0.0
        %501 = vmatpush.msra.mxu0 0.0
        %502 = vmatpush.msra.mxu0 %v481
        %503 = vmatmul.f32.gmra.mxu0 %v479
        %v504 = vpop.f32.mrf.mxu0
        %v505 = vadd.f32 0.0, %v504
        %506 = vdwg.mxu0
        %507 = vmatpush.msra.mxu0 0.0
        %508 = vmatpush.msra.mxu0 0.0
        %509 = vmatpush.msra.mxu0 0.0
        %510 = vmatpush.msra.mxu0 0.0
        %511 = vmatpush.msra.mxu0 0.0
        %512 = vmatpush.msra.mxu0 0.0
        %513 = vmatpush.msra.mxu0 0.0
        %514 = vmatpush.msra.mxu0 0.0
        %515 = vmatpush.msra.mxu0 0.0
        %516 = vmatpush.msra.mxu0 0.0
        %517 = vmatpush.msra.mxu0 0.0
        %518 = vmatpush.msra.mxu0 0.0
        %519 = vmatpush.msra.mxu0 0.0
        %520 = vmatpush.msra.mxu0 0.0
        %521 = vmatpush.msra.mxu0 0.0
        %522 = vmatpush.msra.mxu0 %v483
        %523 = vmatmul.f32.gmra.mxu0 %v479
        %v524 = vpop.f32.mrf.mxu0
        %v525 = vadd.f32 0.0, %v524
        %526 = vdwg.mxu0
        %527 = vmatpush.msra.mxu0 0.0
        %528 = vmatpush.msra.mxu0 0.0
        %529 = vmatpush.msra.mxu0 0.0
        %530 = vmatpush.msra.mxu0 0.0
        %531 = vmatpush.msra.mxu0 0.0
        %532 = vmatpush.msra.mxu0 0.0
        %533 = vmatpush.msra.mxu0 0.0
        %534 = vmatpush.msra.mxu0 0.0
        %535 = vmatpush.msra.mxu0 0.0
        %536 = vmatpush.msra.mxu0 0.0
        %537 = vmatpush.msra.mxu0 0.0
        %538 = vmatpush.msra.mxu0 0.0
        %539 = vmatpush.msra.mxu0 0.0
        %540 = vmatpush.msra.mxu0 0.0
        %541 = vmatpush.msra.mxu0 0.0
        %542 = vmatpush.msra.mxu0 %v485
        %543 = vmatmul.f32.gmra.mxu0 %v479
        %v544 = vpop.f32.mrf.mxu0
        %v545 = vadd.f32 0.0, %v544
        %546 = vdwg.mxu0
        %v547 = vadd.f32 %v454, %v505
        %v548 = vadd.f32 %v455, %v525
        %v549 = vadd.f32 %v456, %v545
        %v550 = vld [vmem:[%s195] sm:$0xff]
        %v551 = vld [vmem:[%s195 + $0x8] sm:$0xf]
        %s552 = scalar_lea.vmem %s1, 32
        %v553 = vld [vmem:[%s552] sm:$0xff]
        %556 = vst [vmem:[#allocation1] ss:$2 sm:$0xff] %v550
        %s557 = scalar_lea.vmem [#allocation1], 16
        %558 = vst [vmem:[%s557] ss:$2 sm:$0xff] %v551
        %v559 = vld.sshfl [vmem:[#allocation1] sm:$0xff pattern:$0x75316420]
        %v560 = vld.sshfl [vmem:[#allocation1 + $0x8] sm:$0xff pattern:$0x75316420]
        %v561 = vld.sshfl [vmem:[#allocation1 + $0x10] sm:$0xff pattern:$0x75316420]
        %562 = vrot.lane.b32.xlu0 %v559, 109
        %v563 = vpop.permute.xlu0 %562
        %564 = vrot.lane.b32.xlu0 %v560, 109
        %v565 = vpop.permute.xlu0 %564
        %566 = vrot.lane.b32.xlu0 %v561, 109
        %v567 = vpop.permute.xlu0 %566
        %vm568 = vcmask 891904
        %v569 = vsel %vm568, %v563, %v565
        %v570 = vsel %vm568, %v565, %v567
        %v572 = vsel %vm218, %v553, 0
        %v574 = vsel %vm222, %v569, 0
        %v576 = vsel %vm222, %v570, 0
        %v578 = vsel %vm222, %v567, 0
        %580 = vmatpush.msra.mxu0 0.0
        %581 = vmatpush.msra.mxu0 0.0
        %582 = vmatpush.msra.mxu0 0.0
        %583 = vmatpush.msra.mxu0 0.0
        %584 = vmatpush.msra.mxu0 0.0
        %585 = vmatpush.msra.mxu0 0.0
        %586 = vmatpush.msra.mxu0 0.0
        %587 = vmatpush.msra.mxu0 0.0
        %588 = vmatpush.msra.mxu0 0.0
        %589 = vmatpush.msra.mxu0 0.0
        %590 = vmatpush.msra.mxu0 0.0
        %591 = vmatpush.msra.mxu0 0.0
        %592 = vmatpush.msra.mxu0 0.0
        %593 = vmatpush.msra.mxu0 0.0
        %594 = vmatpush.msra.mxu0 0.0
        %595 = vmatpush.msra.mxu0 %v574
        %596 = vmatmul.f32.gmra.mxu0 %v572
        %v597 = vpop.f32.mrf.mxu0
        %v598 = vadd.f32 0.0, %v597
        %599 = vdwg.mxu0
        %600 = vmatpush.msra.mxu0 0.0
        %601 = vmatpush.msra.mxu0 0.0
        %602 = vmatpush.msra.mxu0 0.0
        %603 = vmatpush.msra.mxu0 0.0
        %604 = vmatpush.msra.mxu0 0.0
        %605 = vmatpush.msra.mxu0 0.0
        %606 = vmatpush.msra.mxu0 0.0
        %607 = vmatpush.msra.mxu0 0.0
        %608 = vmatpush.msra.mxu0 0.0
        %609 = vmatpush.msra.mxu0 0.0
        %610 = vmatpush.msra.mxu0 0.0
        %611 = vmatpush.msra.mxu0 0.0
        %612 = vmatpush.msra.mxu0 0.0
        %613 = vmatpush.msra.mxu0 0.0
        %614 = vmatpush.msra.mxu0 0.0
        %615 = vmatpush.msra.mxu0 %v576
        %616 = vmatmul.f32.gmra.mxu0 %v572
        %v617 = vpop.f32.mrf.mxu0
        %v618 = vadd.f32 0.0, %v617
        %619 = vdwg.mxu0
        %620 = vmatpush.msra.mxu0 0.0
        %621 = vmatpush.msra.mxu0 0.0
        %622 = vmatpush.msra.mxu0 0.0
        %623 = vmatpush.msra.mxu0 0.0
        %624 = vmatpush.msra.mxu0 0.0
        %625 = vmatpush.msra.mxu0 0.0
        %626 = vmatpush.msra.mxu0 0.0
        %627 = vmatpush.msra.mxu0 0.0
        %628 = vmatpush.msra.mxu0 0.0
        %629 = vmatpush.msra.mxu0 0.0
        %630 = vmatpush.msra.mxu0 0.0
        %631 = vmatpush.msra.mxu0 0.0
        %632 = vmatpush.msra.mxu0 0.0
        %633 = vmatpush.msra.mxu0 0.0
        %634 = vmatpush.msra.mxu0 0.0
        %635 = vmatpush.msra.mxu0 %v578
        %636 = vmatmul.f32.gmra.mxu0 %v572
        %v637 = vpop.f32.mrf.mxu0
        %v638 = vadd.f32 0.0, %v637
        %639 = vdwg.mxu0
        %v640 = vadd.f32 %v547, %v598
        %v641 = vadd.f32 %v548, %v618
        %v642 = vadd.f32 %v549, %v638
        %v643 = vld [vmem:[%s195] sm:$0xff]
        %v644 = vld [vmem:[%s195 + $0x8] sm:$0xf]
        %s645 = scalar_lea.vmem %s1, 40
        %v646 = vld [vmem:[%s645] sm:$0xff]
        %649 = vst [vmem:[#allocation1] ss:$2 sm:$0xff] %v643
        %s650 = scalar_lea.vmem [#allocation1], 16
        %651 = vst [vmem:[%s650] ss:$2 sm:$0xff] %v644
        %v652 = vld.sshfl [vmem:[#allocation1] sm:$0xff pattern:$0x75316420]
        %v653 = vld.sshfl [vmem:[#allocation1 + $0x8] sm:$0xff pattern:$0x75316420]
        %v654 = vld.sshfl [vmem:[#allocation1 + $0x10] sm:$0xff pattern:$0x75316420]
        %655 = vrot.lane.b32.xlu0 %v652, 108
        %v656 = vpop.permute.xlu0 %655
        %657 = vrot.lane.b32.xlu0 %v653, 108
        %v658 = vpop.permute.xlu0 %657
        %659 = vrot.lane.b32.xlu0 %v654, 108
        %v660 = vpop.permute.xlu0 %659
        %vm661 = vcmask 883712
        %v662 = vsel %vm661, %v656, %v658
        %v663 = vsel %vm661, %v658, %v660
        %v665 = vsel %vm218, %v646, 0
        %v667 = vsel %vm222, %v662, 0
        %v669 = vsel %vm222, %v663, 0
        %v671 = vsel %vm222, %v660, 0
        %673 = vmatpush.msra.mxu0 0.0
        %674 = vmatpush.msra.mxu0 0.0
        %675 = vmatpush.msra.mxu0 0.0
        %676 = vmatpush.msra.mxu0 0.0
        %677 = vmatpush.msra.mxu0 0.0
        %678 = vmatpush.msra.mxu0 0.0
        %679 = vmatpush.msra.mxu0 0.0
        %680 = vmatpush.msra.mxu0 0.0
        %681 = vmatpush.msra.mxu0 0.0
        %682 = vmatpush.msra.mxu0 0.0
        %683 = vmatpush.msra.mxu0 0.0
        %684 = vmatpush.msra.mxu0 0.0
        %685 = vmatpush.msra.mxu0 0.0
        %686 = vmatpush.msra.mxu0 0.0
        %687 = vmatpush.msra.mxu0 0.0
        %688 = vmatpush.msra.mxu0 %v667
        %689 = vmatmul.f32.gmra.mxu0 %v665
        %v690 = vpop.f32.mrf.mxu0
        %v691 = vadd.f32 0.0, %v690
        %692 = vdwg.mxu0
        %693 = vmatpush.msra.mxu0 0.0
        %694 = vmatpush.msra.mxu0 0.0
        %695 = vmatpush.msra.mxu0 0.0
        %696 = vmatpush.msra.mxu0 0.0
        %697 = vmatpush.msra.mxu0 0.0
        %698 = vmatpush.msra.mxu0 0.0
        %699 = vmatpush.msra.mxu0 0.0
        %700 = vmatpush.msra.mxu0 0.0
        %701 = vmatpush.msra.mxu0 0.0
        %702 = vmatpush.msra.mxu0 0.0
        %703 = vmatpush.msra.mxu0 0.0
        %704 = vmatpush.msra.mxu0 0.0
        %705 = vmatpush.msra.mxu0 0.0
        %706 = vmatpush.msra.mxu0 0.0
        %707 = vmatpush.msra.mxu0 0.0
        %708 = vmatpush.msra.mxu0 %v669
        %709 = vmatmul.f32.gmra.mxu0 %v665
        %v710 = vpop.f32.mrf.mxu0
        %v711 = vadd.f32 0.0, %v710
        %712 = vdwg.mxu0
        %713 = vmatpush.msra.mxu0 0.0
        %714 = vmatpush.msra.mxu0 0.0
        %715 = vmatpush.msra.mxu0 0.0
        %716 = vmatpush.msra.mxu0 0.0
        %717 = vmatpush.msra.mxu0 0.0
        %718 = vmatpush.msra.mxu0 0.0
        %719 = vmatpush.msra.mxu0 0.0
        %720 = vmatpush.msra.mxu0 0.0
        %721 = vmatpush.msra.mxu0 0.0
        %722 = vmatpush.msra.mxu0 0.0
        %723 = vmatpush.msra.mxu0 0.0
        %724 = vmatpush.msra.mxu0 0.0
        %725 = vmatpush.msra.mxu0 0.0
        %726 = vmatpush.msra.mxu0 0.0
        %727 = vmatpush.msra.mxu0 0.0
        %728 = vmatpush.msra.mxu0 %v671
        %729 = vmatmul.f32.gmra.mxu0 %v665
        %v730 = vpop.f32.mrf.mxu0
        %v731 = vadd.f32 0.0, %v730
        %732 = vdwg.mxu0
        %v733 = vadd.f32 %v640, %v691
        %v734 = vadd.f32 %v641, %v711
        %v735 = vadd.f32 %v642, %v731
        %v736 = vld [vmem:[%s195] sm:$0xff]
        %v737 = vld [vmem:[%s195 + $0x8] sm:$0xf]
        %s738 = scalar_lea.vmem %s1, 48
        %v739 = vld [vmem:[%s738] sm:$0xff]
        %742 = vst [vmem:[#allocation1] ss:$2 sm:$0xff] %v736
        %s743 = scalar_lea.vmem [#allocation1], 16
        %744 = vst [vmem:[%s743] ss:$2 sm:$0xff] %v737
        %v745 = vld.sshfl [vmem:[#allocation1] sm:$0xff pattern:$0x75316420]
        %v746 = vld.sshfl [vmem:[#allocation1 + $0x8] sm:$0xff pattern:$0x75316420]
        %v747 = vld.sshfl [vmem:[#allocation1 + $0x10] sm:$0xff pattern:$0x75316420]
        %748 = vrot.lane.b32.xlu0 %v745, 92
        %v749 = vpop.permute.xlu0 %748
        %750 = vrot.lane.b32.xlu0 %v746, 92
        %v751 = vpop.permute.xlu0 %750
        %752 = vrot.lane.b32.xlu0 %v747, 92
        %v753 = vpop.permute.xlu0 %752
        %vm754 = vcmask 752640
        %v755 = vsel %vm754, %v749, %v751
        %v756 = vsel %vm754, %v751, %v753
        %v758 = vsel %vm218, %v739, 0
        %v760 = vsel %vm222, %v755, 0
        %v762 = vsel %vm222, %v756, 0
        %v764 = vsel %vm222, %v753, 0
        %766 = vmatpush.msra.mxu0 0.0
        %767 = vmatpush.msra.mxu0 0.0
        %768 = vmatpush.msra.mxu0 0.0
        %769 = vmatpush.msra.mxu0 0.0
        %770 = vmatpush.msra.mxu0 0.0
        %771 = vmatpush.msra.mxu0 0.0
        %772 = vmatpush.msra.mxu0 0.0
        %773 = vmatpush.msra.mxu0 0.0
        %774 = vmatpush.msra.mxu0 0.0
        %775 = vmatpush.msra.mxu0 0.0
        %776 = vmatpush.msra.mxu0 0.0
        %777 = vmatpush.msra.mxu0 0.0
        %778 = vmatpush.msra.mxu0 0.0
        %779 = vmatpush.msra.mxu0 0.0
        %780 = vmatpush.msra.mxu0 0.0
        %781 = vmatpush.msra.mxu0 %v760
        %782 = vmatmul.f32.gmra.mxu0 %v758
        %v783 = vpop.f32.mrf.mxu0
        %v784 = vadd.f32 0.0, %v783
        %785 = vdwg.mxu0
        %786 = vmatpush.msra.mxu0 0.0
        %787 = vmatpush.msra.mxu0 0.0
        %788 = vmatpush.msra.mxu0 0.0
        %789 = vmatpush.msra.mxu0 0.0
        %790 = vmatpush.msra.mxu0 0.0
        %791 = vmatpush.msra.mxu0 0.0
        %792 = vmatpush.msra.mxu0 0.0
        %793 = vmatpush.msra.mxu0 0.0
        %794 = vmatpush.msra.mxu0 0.0
        %795 = vmatpush.msra.mxu0 0.0
        %796 = vmatpush.msra.mxu0 0.0
        %797 = vmatpush.msra.mxu0 0.0
        %798 = vmatpush.msra.mxu0 0.0
        %799 = vmatpush.msra.mxu0 0.0
        %800 = vmatpush.msra.mxu0 0.0
        %801 = vmatpush.msra.mxu0 %v762
        %802 = vmatmul.f32.gmra.mxu0 %v758
        %v803 = vpop.f32.mrf.mxu0
        %v804 = vadd.f32 0.0, %v803
        %805 = vdwg.mxu0
        %806 = vmatpush.msra.mxu0 0.0
        %807 = vmatpush.msra.mxu0 0.0
        %808 = vmatpush.msra.mxu0 0.0
        %809 = vmatpush.msra.mxu0 0.0
        %810 = vmatpush.msra.mxu0 0.0
        %811 = vmatpush.msra.mxu0 0.0
        %812 = vmatpush.msra.mxu0 0.0
        %813 = vmatpush.msra.mxu0 0.0
        %814 = vmatpush.msra.mxu0 0.0
        %815 = vmatpush.msra.mxu0 0.0
        %816 = vmatpush.msra.mxu0 0.0
        %817 = vmatpush.msra.mxu0 0.0
        %818 = vmatpush.msra.mxu0 0.0
        %819 = vmatpush.msra.mxu0 0.0
        %820 = vmatpush.msra.mxu0 0.0
        %821 = vmatpush.msra.mxu0 %v764
        %822 = vmatmul.f32.gmra.mxu0 %v758
        %v823 = vpop.f32.mrf.mxu0
        %v824 = vadd.f32 0.0, %v823
        %825 = vdwg.mxu0
        %v826 = vadd.f32 %v733, %v784
        %v827 = vadd.f32 %v734, %v804
        %v828 = vadd.f32 %v735, %v824
        %v829 = vld [vmem:[%s195] sm:$0xff]
        %v830 = vld [vmem:[%s195 + $0x8] sm:$0xf]
        %s831 = scalar_lea.vmem %s1, 56
        %v832 = vld [vmem:[%s831] sm:$0xff]
        %835 = vst [vmem:[#allocation1] ss:$2 sm:$0xff] %v829
        %s836 = scalar_lea.vmem [#allocation1], 16
        %837 = vst [vmem:[%s836] ss:$2 sm:$0xff] %v830
        %v838 = vld.sshfl [vmem:[#allocation1] sm:$0xff pattern:$0x75316420]
        %v839 = vld.sshfl [vmem:[#allocation1 + $0x8] sm:$0xff pattern:$0x75316420]
        %v840 = vld.sshfl [vmem:[#allocation1 + $0x10] sm:$0xff pattern:$0x75316420]
        %841 = vrot.lane.b32.xlu0 %v838, 91
        %v842 = vpop.permute.xlu0 %841
        %843 = vrot.lane.b32.xlu0 %v839, 91
        %v844 = vpop.permute.xlu0 %843
        %845 = vrot.lane.b32.xlu0 %v840, 91
        %v846 = vpop.permute.xlu0 %845
        %vm847 = vcmask 744448
        %v848 = vsel %vm847, %v842, %v844
        %v849 = vsel %vm847, %v844, %v846
        %v851 = vsel %vm218, %v832, 0
        %v853 = vsel %vm222, %v848, 0
        %v855 = vsel %vm222, %v849, 0
        %v857 = vsel %vm222, %v846, 0
        %859 = vmatpush.msra.mxu0 0.0
        %860 = vmatpush.msra.mxu0 0.0
        %861 = vmatpush.msra.mxu0 0.0
        %862 = vmatpush.msra.mxu0 0.0
        %863 = vmatpush.msra.mxu0 0.0
        %864 = vmatpush.msra.mxu0 0.0
        %865 = vmatpush.msra.mxu0 0.0
        %866 = vmatpush.msra.mxu0 0.0
        %867 = vmatpush.msra.mxu0 0.0
        %868 = vmatpush.msra.mxu0 0.0
        %869 = vmatpush.msra.mxu0 0.0
        %870 = vmatpush.msra.mxu0 0.0
        %871 = vmatpush.msra.mxu0 0.0
        %872 = vmatpush.msra.mxu0 0.0
        %873 = vmatpush.msra.mxu0 0.0
        %874 = vmatpush.msra.mxu0 %v853
        %875 = vmatmul.f32.gmra.mxu0 %v851
        %v876 = vpop.f32.mrf.mxu0
        %v877 = vadd.f32 0.0, %v876
        %878 = vdwg.mxu0
        %879 = vmatpush.msra.mxu0 0.0
        %880 = vmatpush.msra.mxu0 0.0
        %881 = vmatpush.msra.mxu0 0.0
        %882 = vmatpush.msra.mxu0 0.0
        %883 = vmatpush.msra.mxu0 0.0
        %884 = vmatpush.msra.mxu0 0.0
        %885 = vmatpush.msra.mxu0 0.0
        %886 = vmatpush.msra.mxu0 0.0
        %887 = vmatpush.msra.mxu0 0.0
        %888 = vmatpush.msra.mxu0 0.0
        %889 = vmatpush.msra.mxu0 0.0
        %890 = vmatpush.msra.mxu0 0.0
        %891 = vmatpush.msra.mxu0 0.0
        %892 = vmatpush.msra.mxu0 0.0
        %893 = vmatpush.msra.mxu0 0.0
        %894 = vmatpush.msra.mxu0 %v855
        %895 = vmatmul.f32.gmra.mxu0 %v851
        %v896 = vpop.f32.mrf.mxu0
        %v897 = vadd.f32 0.0, %v896
        %898 = vdwg.mxu0
        %899 = vmatpush.msra.mxu0 0.0
        %900 = vmatpush.msra.mxu0 0.0
        %901 = vmatpush.msra.mxu0 0.0
        %902 = vmatpush.msra.mxu0 0.0
        %903 = vmatpush.msra.mxu0 0.0
        %904 = vmatpush.msra.mxu0 0.0
        %905 = vmatpush.msra.mxu0 0.0
        %906 = vmatpush.msra.mxu0 0.0
        %907 = vmatpush.msra.mxu0 0.0
        %908 = vmatpush.msra.mxu0 0.0
        %909 = vmatpush.msra.mxu0 0.0
        %910 = vmatpush.msra.mxu0 0.0
        %911 = vmatpush.msra.mxu0 0.0
        %912 = vmatpush.msra.mxu0 0.0
        %913 = vmatpush.msra.mxu0 0.0
        %914 = vmatpush.msra.mxu0 %v857
        %915 = vmatmul.f32.gmra.mxu0 %v851
        %v916 = vpop.f32.mrf.mxu0
        %v917 = vadd.f32 0.0, %v916
        %918 = vdwg.mxu0
        %v919 = vadd.f32 %v826, %v877
        %v920 = vadd.f32 %v827, %v897
        %v921 = vadd.f32 %v828, %v917
        %v922 = vld [vmem:[%s195] sm:$0xff]
        %v923 = vld [vmem:[%s195 + $0x8] sm:$0xf]
        %s924 = scalar_lea.vmem %s1, 64
        %v925 = vld [vmem:[%s924] sm:$0xff]
        %928 = vst [vmem:[#allocation1] ss:$2 sm:$0xff] %v922
        %s929 = scalar_lea.vmem [#allocation1], 16
        %930 = vst [vmem:[%s929] ss:$2 sm:$0xff] %v923
        %v931 = vld.sshfl [vmem:[#allocation1] sm:$0xff pattern:$0x75316420]
        %v932 = vld.sshfl [vmem:[#allocation1 + $0x8] sm:$0xff pattern:$0x75316420]
        %v933 = vld.sshfl [vmem:[#allocation1 + $0x10] sm:$0xff pattern:$0x75316420]
        %934 = vrot.lane.b32.xlu0 %v931, 90
        %v935 = vpop.permute.xlu0 %934
        %936 = vrot.lane.b32.xlu0 %v932, 90
        %v937 = vpop.permute.xlu0 %936
        %938 = vrot.lane.b32.xlu0 %v933, 90
        %v939 = vpop.permute.xlu0 %938
        %vm940 = vcmask 736256
        %v941 = vsel %vm940, %v935, %v937
        %v942 = vsel %vm940, %v937, %v939
        %v944 = vsel %vm218, %v925, 0
        %v946 = vsel %vm222, %v941, 0
        %v948 = vsel %vm222, %v942, 0
        %v950 = vsel %vm222, %v939, 0
        %952 = vmatpush.msra.mxu0 0.0
        %953 = vmatpush.msra.mxu0 0.0
        %954 = vmatpush.msra.mxu0 0.0
        %955 = vmatpush.msra.mxu0 0.0
        %956 = vmatpush.msra.mxu0 0.0
        %957 = vmatpush.msra.mxu0 0.0
        %958 = vmatpush.msra.mxu0 0.0
        %959 = vmatpush.msra.mxu0 0.0
        %960 = vmatpush.msra.mxu0 0.0
        %961 = vmatpush.msra.mxu0 0.0
        %962 = vmatpush.msra.mxu0 0.0
        %963 = vmatpush.msra.mxu0 0.0
        %964 = vmatpush.msra.mxu0 0.0
        %965 = vmatpush.msra.mxu0 0.0
        %966 = vmatpush.msra.mxu0 0.0
        %967 = vmatpush.msra.mxu0 %v946
        %968 = vmatmul.f32.gmra.mxu0 %v944
        %v969 = vpop.f32.mrf.mxu0
        %v970 = vadd.f32 0.0, %v969
        %971 = vdwg.mxu0
        %972 = vmatpush.msra.mxu0 0.0
        %973 = vmatpush.msra.mxu0 0.0
        %974 = vmatpush.msra.mxu0 0.0
        %975 = vmatpush.msra.mxu0 0.0
        %976 = vmatpush.msra.mxu0 0.0
        %977 = vmatpush.msra.mxu0 0.0
        %978 = vmatpush.msra.mxu0 0.0
        %979 = vmatpush.msra.mxu0 0.0
        %980 = vmatpush.msra.mxu0 0.0
        %981 = vmatpush.msra.mxu0 0.0
        %982 = vmatpush.msra.mxu0 0.0
        %983 = vmatpush.msra.mxu0 0.0
        %984 = vmatpush.msra.mxu0 0.0
        %985 = vmatpush.msra.mxu0 0.0
        %986 = vmatpush.msra.mxu0 0.0
        %987 = vmatpush.msra.mxu0 %v948
        %988 = vmatmul.f32.gmra.mxu0 %v944
        %v989 = vpop.f32.mrf.mxu0
        %v990 = vadd.f32 0.0, %v989
        %991 = vdwg.mxu0
        %992 = vmatpush.msra.mxu0 0.0
        %993 = vmatpush.msra.mxu0 0.0
        %994 = vmatpush.msra.mxu0 0.0
        %995 = vmatpush.msra.mxu0 0.0
        %996 = vmatpush.msra.mxu0 0.0
        %997 = vmatpush.msra.mxu0 0.0
        %998 = vmatpush.msra.mxu0 0.0
        %999 = vmatpush.msra.mxu0 0.0
        %1000 = vmatpush.msra.mxu0 0.0
        %1001 = vmatpush.msra.mxu0 0.0
        %1002 = vmatpush.msra.mxu0 0.0
        %1003 = vmatpush.msra.mxu0 0.0
        %1004 = vmatpush.msra.mxu0 0.0
        %1005 = vmatpush.msra.mxu0 0.0
        %1006 = vmatpush.msra.mxu0 0.0
        %1007 = vmatpush.msra.mxu0 %v950
        %1008 = vmatmul.f32.gmra.mxu0 %v944
        %v1009 = vpop.f32.mrf.mxu0
        %v1010 = vadd.f32 0.0, %v1009
        %1011 = vdwg.mxu0
        %v1012 = vadd.f32 %v919, %v970
        %v1013 = vadd.f32 %v920, %v990
        %v1014 = vadd.f32 %v921, %v1010
        %v1015 = vld [vmem:[%s2] sm:$0xff]
        %1017 = vset.pattern.permute.xlu0 0
        %1018 = vperm.xlu0 %1017, %v1015
        %v1019 = vpop.permute.xlu0 %1018
        %v1021 = vadd.f32 %v1012, %v1019
        %v1022 = vadd.f32 %v1013, %v1019
        %v1023 = vadd.f32 %v1014, %v1019
        %v1024 = vmax.f32 %v1021, 0.0
        %v1025 = vmax.f32 %v1022, 0.0
        %v1026 = vmax.f32 %v1023, 0.0
        %1030 = vrot.lane.b32.xlu0 %v1024, 110
        %v1031 = vpop.permute.xlu0 %1030
        %1032 = vrot.lane.b32.xlu0 %v1025, 110
        %v1033 = vpop.permute.xlu0 %1032
        %1034 = vrot.lane.b32.xlu0 %v1026, 110
        %v1035 = vpop.permute.xlu0 %1034
        %v1036 = vsel %vm475, %v1031, %v1033
        %v1037 = vsel %vm475, %v1033, %v1035
        %v1041 = vmax.f32 %v1024, %v1036
        %v1042 = vmax.f32 %v1025, %v1037
        %v1043 = vmax.f32 %v1026, %v1035
        %1047 = vrot.lane.b32.xlu0 %v1041, 127
        %v1048 = vpop.permute.xlu0 %1047
        %1049 = vrot.lane.b32.xlu0 %v1042, 127
        %v1050 = vpop.permute.xlu0 %1049
        %1051 = vrot.lane.b32.xlu0 %v1043, 127
        %v1052 = vpop.permute.xlu0 %1051
        %v1053 = vsel %vm215, %v1048, %v1050
        %v1054 = vsel %vm215, %v1050, %v1052
        %v1058 = vmax.f32 %v1041, %v1053
        %v1059 = vmax.f32 %v1042, %v1054
        %v1060 = vmax.f32 %v1043, %v1052
        %v1061 = vld [vmem:[%s3] sm:$0xff]
        %v1062 = vld [vmem:[%s3 + $0x8] sm:$0xff]
        %v1063 = vld [vmem:[%s3 + $0x10] sm:$0xff]
        %v1064 = vld [vmem:[%s3 + $0x18] sm:$0xff]
        %v1065 = vld [vmem:[%s3 + $0x20] sm:$0xff]
        %v1066 = vld [vmem:[%s3 + $0x28] sm:$0xff]
        %v1067 = vld [vmem:[%s3 + $0x30] sm:$0xff]
        %v1068 = vld [vmem:[%s3 + $0x38] sm:$0xff]
        %v1069 = vld [vmem:[%s3 + $0x40] sm:$0xff]
        %v1070 = vld [vmem:[%s3 + $0x48] sm:$0xff]
        %v1071 = vld [vmem:[%s3 + $0x50] sm:$0xff]
        %v1072 = vld [vmem:[%s3 + $0x58] sm:$0xff]
        %v1073 = vld [vmem:[%s3 + $0x60] sm:$0xff]
        %v1074 = vld [vmem:[%s3 + $0x68] sm:$0xff]
        %v1075 = vld [vmem:[%s3 + $0x70] sm:$0xff]
        %v1076 = vld [vmem:[%s3 + $0x78] sm:$0xff]
        %v1077 = vld [vmem:[%s3 + $0x80] sm:$0xff]
        %v1078 = vld [vmem:[%s3 + $0x88] sm:$0xff]
        %v1079 = vld [vmem:[%s3 + $0x90] sm:$0xff]
        %v1080 = vld [vmem:[%s3 + $0x98] sm:$0xff]
        %v1081 = vld [vmem:[%s3 + $0xa0] sm:$0xff]
        %v1082 = vld [vmem:[%s3 + $0xa8] sm:$0xff]
        %v1083 = vld [vmem:[%s3 + $0xb0] sm:$0xff]
        %v1084 = vld [vmem:[%s3 + $0xb8] sm:$0xff]
        %v1085 = vld [vmem:[%s3 + $0xc0] sm:$0xff]
        %v1086 = vld [vmem:[%s3 + $0xc8] sm:$0xff]
        %v1087 = vld [vmem:[%s3 + $0xd0] sm:$0xff]
        %v1088 = vld [vmem:[%s3 + $0xd8] sm:$0xff]
        %v1089 = vld [vmem:[%s3 + $0xe0] sm:$0xff]
        %v1090 = vld [vmem:[%s3 + $0xe8] sm:$0xff]
        %v1091 = vld [vmem:[%s3 + $0xf0] sm:$0xff]
        %v1092 = vld [vmem:[%s3 + $0xf8] sm:$0xff]
        %v1093 = vld [vmem:[%s3 + $0x100] sm:$0xff]
        %v1094 = vld [vmem:[%s3 + $0x108] sm:$0x1f]
        %vm1095 = vcmask 105472
        %v1097 = vsel %vm1095, %v1060, 0
        %vm1099 = vcmask 1044480
        %v1101 = vsel %vm1099, %v1094, 0
        %1103 = vmatpush.msra.mxu0 %v1076
        %1104 = vmatpush.msra.mxu0 %v1075
        %1105 = vmatpush.msra.mxu0 %v1074
        %1106 = vmatpush.msra.mxu0 %v1073
        %1107 = vmatpush.msra.mxu0 %v1072
        %1108 = vmatpush.msra.mxu0 %v1071
        %1109 = vmatpush.msra.mxu0 %v1070
        %1110 = vmatpush.msra.mxu0 %v1069
        %1111 = vmatpush.msra.mxu0 %v1068
        %1112 = vmatpush.msra.mxu0 %v1067
        %1113 = vmatpush.msra.mxu0 %v1066
        %1114 = vmatpush.msra.mxu0 %v1065
        %1115 = vmatpush.msra.mxu0 %v1064
        %1116 = vmatpush.msra.mxu0 %v1063
        %1117 = vmatpush.msra.mxu0 %v1062
        %1118 = vmatpush.msra.mxu0 %v1061
        %1119 = vmatmul.f32.gmra.mxu0 %v1058
        %v1120 = vpop.f32.mrf.mxu0
        %v1121 = vadd.f32 0.0, %v1120
        %1122 = vdwg.mxu0
        %1123 = vmatpush.msra.mxu0 %v1092
        %1124 = vmatpush.msra.mxu0 %v1091
        %1125 = vmatpush.msra.mxu0 %v1090
        %1126 = vmatpush.msra.mxu0 %v1089
        %1127 = vmatpush.msra.mxu0 %v1088
        %1128 = vmatpush.msra.mxu0 %v1087
        %1129 = vmatpush.msra.mxu0 %v1086
        %1130 = vmatpush.msra.mxu0 %v1085
        %1131 = vmatpush.msra.mxu0 %v1084
        %1132 = vmatpush.msra.mxu0 %v1083
        %1133 = vmatpush.msra.mxu0 %v1082
        %1134 = vmatpush.msra.mxu0 %v1081
        %1135 = vmatpush.msra.mxu0 %v1080
        %1136 = vmatpush.msra.mxu0 %v1079
        %1137 = vmatpush.msra.mxu0 %v1078
        %1138 = vmatpush.msra.mxu0 %v1077
        %1139 = vmatmul.f32.gmra.mxu0 %v1059
        %v1140 = vpop.f32.mrf.mxu0
        %v1141 = vadd.f32 %v1121, %v1140
        %1142 = vdwg.mxu0
        %1143 = vmatpush.msra.mxu0 0.0
        %1144 = vmatpush.msra.mxu0 0.0
        %1145 = vmatpush.msra.mxu0 0.0
        %1146 = vmatpush.msra.mxu0 0.0
        %1147 = vmatpush.msra.mxu0 0.0
        %1148 = vmatpush.msra.mxu0 0.0
        %1149 = vmatpush.msra.mxu0 0.0
        %1150 = vmatpush.msra.mxu0 0.0
        %1151 = vmatpush.msra.mxu0 0.0
        %1152 = vmatpush.msra.mxu0 0.0
        %1153 = vmatpush.msra.mxu0 0.0
        %1154 = vmatpush.msra.mxu0 0.0
        %1155 = vmatpush.msra.mxu0 0.0
        %1156 = vmatpush.msra.mxu0 0.0
        %1157 = vmatpush.msra.mxu0 %v1101
        %1158 = vmatpush.msra.mxu0 %v1093
        %1159 = vmatmul.f32.gmra.mxu0 %v1097
        %v1160 = vpop.f32.mrf.mxu0
        %v1161 = vadd.f32 %v1141, %v1160
        %1162 = vdwg.mxu0
        %vm1163 = vcmask 523264
        %1164 = vst.msk [vmem:[%s190] sm:$0xff] %vm1163, %v1161
        %s1165 = sand.u32 %s115, 1
        %s1166 = scalar_lea.sflag [#allocation3], %s1165
        %s1167 = sand.u32 %s115, 1
        %s1168 = smul.addr %s1167, 8
        %s1169 = scalar_lea.vmem [#allocation2], %s1168
        // Predicated region
        $region37: #{tpu_custom_call.1} parent=35 // pred_check
          %p1170 = pneg %p125
        $region38: #{tpu_custom_call.1} parent=35 // pred_check_branch
          %1172 = sbr.rel (%p1170) target = $region40
        $region39: #{tpu_custom_call.1} parent=35 // pred_region
          %1174 = vsyncadd %s1166, 0
          %s1175 = smul.addr %s18, 8
          %s1176 = scalar_lea.hbm %s4, %s1175
          %s1178 = sshll.u32 %s1169, 4
          %s1179 = int_to_ptr.vmem [resolvable:$true] %s1178
          %s1180 = sshll.u32 %s1176, 4
          %s1181 = int_to_ptr.hbm [resolvable:$true] %s1180
          %1183 = dma.vmem_to_hbm [thread:$0]  %s1179, 128, %s1181, %s1166
        $region40: #{tpu_custom_call.1} parent=35 // pred_fallthru
          _
      $region36: #{tpu_custom_call.1} parent=5 // pred_fallthru
        _
      %p1184 = scmp.le.s32.totalorder 2, %s13
      // Predicated region
      $region41: #{tpu_custom_call.1} parent=5 // pred_check
        %p1185 = pneg %p1184
      $region42: #{tpu_custom_call.1} parent=5 // pred_check_branch
        %1187 = sbr.rel (%p1185) target = $region44
      $region43: #{tpu_custom_call.1} parent=5 // pred_region
        %s1188 = ssub.s32 %s13, 2
        // Predicated region
        $region45: #{tpu_custom_call.1} parent=43 // pred_check
          %p1189 = pneg %p131
        $region46: #{tpu_custom_call.1} parent=43 // pred_check_branch
          %1191 = sbr.rel (%p1189) target = $region48
        $region47: #{tpu_custom_call.1} parent=43 // pred_region
          %s1192 = sand.u32 %s116, 1
          %s1193 = scalar_lea.sflag [#allocation3], %s1192
          %s1194 = sand.u32 %s116, 1
          %s1195 = smul.addr %s1194, 8
          %s1196 = scalar_lea.vmem [#allocation2], %s1195
          %1198 = dma.done %s1193, 128
        $region48: #{tpu_custom_call.1} parent=43 // pred_fallthru
          _
      $region44: #{tpu_custom_call.1} parent=5 // pred_fallthru
        _
    $region6: #{tpu_custom_call.1} parent=1 // loop_footer
      %s17 = sadd.s32 1, %s13
    $region7: #{tpu_custom_call.1} parent=1 // loop_footer_branch
      %12 = sbr.rel target = $region3
    $region8: #{tpu_custom_call.1} parent=1 // loop_exit
      _
    %1199 = vsyncpa [#allocation3], 1
    %s1200 = scalar_lea.sflag [#allocation3], 1
    %1201 = vsyncpa %s1200, 1

</llo_original>
